<compile_context>
chip_gen: v5e
topology: v5e:2x2
jax: 0.10.0
libtpu: 0.0.40
codegen_flags: <defaults>
</compile_context>

<pallas_src>
import functools

import jax
import jax.numpy as jnp
from jax.experimental import pallas as pl
from jax.experimental.pallas import tpu as pltpu

LANE = 128      # vreg lane width  (last dim)
SUBLANE = 8     # vreg sublane width (second-to-last dim)


def _round_up(n, m):
    return ((n + m - 1) // m) * m


def _fused_mlp_kernel(x_ref, *refs, n_layers, out_dim):
    """One grid step: full fused MLP on a (TILE_B, Din) activation tile.

    refs = (w0, b0, w1, b1, ..., w_last, b_last, o_ref); everything is VMEM-resident.
    Weights are bf16, biases f32; dots accumulate in f32; epilogue math is f32.
    """
    o_ref = refs[-1]
    wb = refs[:-1]

    h = x_ref[...]                                   # (tile, Din) bf16
    for li in range(n_layers):
        w = wb[2 * li][...]                          # bf16 (din_p, dout_p)
        b = wb[2 * li + 1][...]                      # f32  (1, dout_p) -> broadcasts over rows
        y = jnp.dot(h.astype(jnp.bfloat16), w,
                    preferred_element_type=jnp.float32) + b
        if li < n_layers - 1:
            # hidden layer: ReLU; Dropout is identity in eval mode.
            # TODO(synk): training-mode Dropout would need pltpu.prng_seed/prng_random_bits masking.
            h = jnp.maximum(y, 0.0)
        else:
            # output head: sigmoid only on the real output column(s) (EUP work drops 128x).
            h = jax.nn.sigmoid(y[:, :out_dim])
    o_ref[...] = h.astype(o_ref.dtype)


@functools.partial(jax.jit, static_argnames=("out_dim", "tile_b"))
def stroke_dnn_forward(x, padded_params, *, out_dim, tile_b=2048):
    """x: (B, Din) f32, padded_params: [(W_bf16(in,out_pad), b_f32(1,out_pad)), ...] -> (B, out_dim)."""
    B, Din = x.shape
    n_layers = len(padded_params)

    # Batch tiling: sublane-aligned. Small batches -> single step (dispatch-dominated anyway);
    # larger batches -> at least 2 grid steps (v7x megacore sharding), capped at tile_b rows/step.
    if B <= 256:
        tile = max(SUBLANE, _round_up(B, SUBLANE))
    else:
        tile = min(tile_b, _round_up(-(-B // 2), SUBLANE))
    b_pad = _round_up(B, tile)

    # bf16 cast (MXU operand) + minimal batch pad; both fuse under jit (no extra HBM passes).
    x_bf = x.astype(jnp.bfloat16)
    if b_pad != B:
        x_bf = jnp.pad(x_bf, ((0, b_pad - B), (0, 0)))

    flat_params = []
    # Input fed unpadded: last dim == full array dim is a legal block shape.
    in_specs = [pl.BlockSpec((tile, Din), lambda i: (i, 0))]
    for (w, b) in padded_params:
        flat_params.append(w)
        flat_params.append(b)
        # Weights/biases: full-array blocks, same block every grid step -> stay VMEM-resident.
        in_specs.append(pl.BlockSpec(w.shape, lambda i: (0, 0)))
        in_specs.append(pl.BlockSpec(b.shape, lambda i: (0, 0)))

    # Advisory cost estimate for XLA's scheduler around the custom call.
    flops = 2 * b_pad * sum(int(w.shape[0]) * int(w.shape[1]) for (w, _) in padded_params)
    bytes_accessed = int(
        x_bf.size * x_bf.dtype.itemsize
        + sum(w.size * w.dtype.itemsize + b.size * b.dtype.itemsize for (w, b) in padded_params)
        + b_pad * out_dim * 4
    )
    cost = pl.CostEstimate(flops=flops,
                           transcendentals=b_pad * out_dim,
                           bytes_accessed=bytes_accessed)

    kernel = functools.partial(_fused_mlp_kernel, n_layers=n_layers, out_dim=out_dim)
    out = pl.pallas_call(
        kernel,
        out_shape=jax.ShapeDtypeStruct((b_pad, out_dim), jnp.float32),
        grid=(b_pad // tile,),
        in_specs=in_specs,
        out_specs=pl.BlockSpec((tile, out_dim), lambda i: (i, 0)),
        compiler_params=pltpu.CompilerParams(
            # Independent batch tiles -> shard across the 2 TensorCores on v7x.
            dimension_semantics=("parallel",),
        ),
        cost_estimate=cost,
    )(x_bf, *flat_params)

    return out[:B]


def init_params(key, num_dims):
    """Unpadded f32 params mirroring PyTorch nn.Linear init; W stored as (in, out)."""
    params = []
    n_layers = len(num_dims) - 1  # hidden layers + output layer
    keys = jax.random.split(key, 2 * n_layers)
    for li in range(n_layers):
        din, dout = num_dims[li], num_dims[li + 1]
        bound = 1.0 / (din ** 0.5)  # PyTorch default uniform bound
        w = jax.random.uniform(keys[2 * li], (din, dout), jnp.float32, -bound, bound)
        b = jax.random.uniform(keys[2 * li + 1], (dout,), jnp.float32, -bound, bound)
        params.append((w, b))
    return params


def pad_params(params):
    """One-time kernel layout: weights bf16 with output dims zero-padded to 128 lanes (and input
    dims of non-first layers padded to match the previous layer's padded width); biases f32 (1, Dpad).
    Zero padding keeps the math exact through the ReLU layers."""
    padded = []
    for li, (w, b) in enumerate(params):
        din, dout = w.shape
        din_p = din if li == 0 else _round_up(din, LANE)   # first layer stays at the true Din
        dout_p = _round_up(dout, LANE)
        w_p = jnp.zeros((din_p, dout_p), jnp.bfloat16).at[:din, :dout].set(w.astype(jnp.bfloat16))
        b_p = jnp.zeros((1, dout_p), jnp.float32).at[0, :dout].set(b)
        padded.append((w_p, b_p))
    return padded


def reference_forward(x, params):
    """Plain-JAX f32 reference (unpadded) for correctness checking."""
    for (w, b) in params[:-1]:
        x = jnp.maximum(x @ w + b, 0.0)
    w_out, b_out = params[-1]
    return jax.nn.sigmoid(x @ w_out + b_out)


if __name__ == "__main__":
    # num_dims: [input_features, hidden1, hidden2, output] (binary classification head)
    num_dims = [16, 32, 32, 1]
    batch = 8

    key = jax.random.PRNGKey(0)
    k_x, k_p = jax.random.split(key)
    x = jax.random.normal(k_x, (batch, num_dims[0]), dtype=jnp.float32)

    params = init_params(k_p, num_dims)          # PyTorch-equivalent (unpadded f32) params
    padded_params = pad_params(params)           # bf16 lane-dense kernel layout, built once

    out = stroke_dnn_forward(x, padded_params, out_dim=num_dims[-1])
    out = jax.block_until_ready(out)

    ref = reference_forward(x, params)
    assert out.shape == (batch, num_dims[-1])
    # bf16 dot operands (f32 accumulation) -> relaxed tolerance vs. the f32 reference.
    assert jnp.allclose(out, ref, atol=2e-2, rtol=2e-2), "Pallas output mismatch vs reference"

    print("KERNEL_OK")
</pallas_src>

<mosaic_0001>
module attributes {stable_mosaic.version = 11 : i64} {
  func.func @_fused_mlp_kernel(%arg0: i32, %arg1: memref<8x16xbf16, #tpu.memory_space<vmem>>, %arg2: memref<16x128xbf16, #tpu.memory_space<vmem>>, %arg3: memref<1x128xf32, #tpu.memory_space<vmem>>, %arg4: memref<128x128xbf16, #tpu.memory_space<vmem>>, %arg5: memref<1x128xf32, #tpu.memory_space<vmem>>, %arg6: memref<128x128xbf16, #tpu.memory_space<vmem>>, %arg7: memref<1x128xf32, #tpu.memory_space<vmem>>, %arg8: memref<8x1xf32, #tpu.memory_space<vmem>>) attributes {dimension_semantics = [#tpu.dimension_semantics<parallel>], iteration_bounds = array<i64: 1>, scalar_prefetch = 0 : i64, scratch_operands = 0 : i64, tpu.core_type = #tpu.core_type<tc>, window_params = [{transform_indices = @transform_0, window_bounds = array<i64: 8, 16>}, {pipeline_mode = #tpu.pipeline_mode<synchronous>, transform_indices = @transform_1, window_bounds = array<i64: 16, 128>}, {pipeline_mode = #tpu.pipeline_mode<synchronous>, transform_indices = @transform_2, window_bounds = array<i64: 1, 128>}, {pipeline_mode = #tpu.pipeline_mode<synchronous>, transform_indices = @transform_3, window_bounds = array<i64: 128, 128>}, {pipeline_mode = #tpu.pipeline_mode<synchronous>, transform_indices = @transform_4, window_bounds = array<i64: 1, 128>}, {pipeline_mode = #tpu.pipeline_mode<synchronous>, transform_indices = @transform_5, window_bounds = array<i64: 128, 128>}, {pipeline_mode = #tpu.pipeline_mode<synchronous>, transform_indices = @transform_6, window_bounds = array<i64: 1, 128>}, {transform_indices = @transform_7, window_bounds = array<i64: 8, 1>}]} {
    %c0 = arith.constant 0 : index
    %c0_0 = arith.constant 0 : index
    %0 = vector.load %arg1[%c0, %c0_0] : memref<8x16xbf16, #tpu.memory_space<vmem>>, vector<8x16xbf16>
    %c0_1 = arith.constant 0 : index
    %c0_2 = arith.constant 0 : index
    %1 = vector.load %arg2[%c0_1, %c0_2] : memref<16x128xbf16, #tpu.memory_space<vmem>>, vector<16x128xbf16>
    %c0_3 = arith.constant 0 : index
    %c0_4 = arith.constant 0 : index
    %2 = vector.load %arg3[%c0_3, %c0_4] : memref<1x128xf32, #tpu.memory_space<vmem>>, vector<1x128xf32>
    %cst = arith.constant dense<0.000000e+00> : vector<8x128xf32>
    %3 = tpu.matmul %0, %1, %cst {dimension_numbers = #tpu.dot_dimension_numbers<[1], [0], [0], [1], [0, 0, 1, 1], [], []>} : vector<8x16xbf16>, vector<16x128xbf16>, vector<8x128xf32> -> vector<8x128xf32>
    %4 = vector.broadcast %2 : vector<1x128xf32> to vector<8x128xf32>
    %5 = arith.addf %3, %4 : vector<8x128xf32>
    %cst_5 = arith.constant 0.000000e+00 : f32
    %6 = vector.broadcast %cst_5 : f32 to vector<8x128xf32>
    %7 = arith.maximumf %5, %6 : vector<8x128xf32>
    %c0_6 = arith.constant 0 : index
    %c0_7 = arith.constant 0 : index
    %8 = vector.load %arg4[%c0_6, %c0_7] : memref<128x128xbf16, #tpu.memory_space<vmem>>, vector<128x128xbf16>
    %c0_8 = arith.constant 0 : index
    %c0_9 = arith.constant 0 : index
    %9 = vector.load %arg5[%c0_8, %c0_9] : memref<1x128xf32, #tpu.memory_space<vmem>>, vector<1x128xf32>
    %10 = arith.truncf %7 : vector<8x128xf32> to vector<8x128xbf16>
    %cst_10 = arith.constant dense<0.000000e+00> : vector<8x128xf32>
    %11 = tpu.matmul %10, %8, %cst_10 {dimension_numbers = #tpu.dot_dimension_numbers<[1], [0], [0], [1], [0, 0, 1, 1], [], []>} : vector<8x128xbf16>, vector<128x128xbf16>, vector<8x128xf32> -> vector<8x128xf32>
    %12 = vector.broadcast %9 : vector<1x128xf32> to vector<8x128xf32>
    %13 = arith.addf %11, %12 : vector<8x128xf32>
    %cst_11 = arith.constant 0.000000e+00 : f32
    %14 = vector.broadcast %cst_11 : f32 to vector<8x128xf32>
    %15 = arith.maximumf %13, %14 : vector<8x128xf32>
    %c0_12 = arith.constant 0 : index
    %c0_13 = arith.constant 0 : index
    %16 = vector.load %arg6[%c0_12, %c0_13] : memref<128x128xbf16, #tpu.memory_space<vmem>>, vector<128x128xbf16>
    %c0_14 = arith.constant 0 : index
    %c0_15 = arith.constant 0 : index
    %17 = vector.load %arg7[%c0_14, %c0_15] : memref<1x128xf32, #tpu.memory_space<vmem>>, vector<1x128xf32>
    %18 = arith.truncf %15 : vector<8x128xf32> to vector<8x128xbf16>
    %cst_16 = arith.constant dense<0.000000e+00> : vector<8x128xf32>
    %19 = tpu.matmul %18, %16, %cst_16 {dimension_numbers = #tpu.dot_dimension_numbers<[1], [0], [0], [1], [0, 0, 1, 1], [], []>} : vector<8x128xbf16>, vector<128x128xbf16>, vector<8x128xf32> -> vector<8x128xf32>
    %20 = vector.broadcast %17 : vector<1x128xf32> to vector<8x128xf32>
    %21 = arith.addf %19, %20 : vector<8x128xf32>
    %22 = vector.extract_strided_slice %21 {offsets = [0, 0], sizes = [8, 1], strides = [1, 1]} : vector<8x128xf32> to vector<8x1xf32>
    %23 = arith.negf %22 : vector<8x1xf32>
    %24 = math.exp %23 : vector<8x1xf32>
    %cst_17 = arith.constant 1.000000e+00 : f32
    %25 = vector.broadcast %cst_17 : f32 to vector<8x1xf32>
    %26 = arith.addf %25, %24 : vector<8x1xf32>
    %27 = arith.divf %25, %26 : vector<8x1xf32>
    %c0_18 = arith.constant 0 : index
    %c0_19 = arith.constant 0 : index
    %28 = vector.load %arg8[%c0_18, %c0_19] : memref<8x1xf32, #tpu.memory_space<vmem>>, vector<8x1xf32>
    tpu.vector_store %arg8[%c0_18, %c0_19], %27 {strides = array<i32>} : memref<8x1xf32, #tpu.memory_space<vmem>>, vector<8x1xf32>,
    return
  }
  func.func @transform_0(%arg0: i32) -> (i32, i32) {
    %c0_i32 = arith.constant 0 : i32
    %c0_i32_0 = arith.constant 0 : i32
    return %arg0, %c0_i32 : i32, i32
  }
  func.func @transform_1(%arg0: i32) -> (i32, i32) {
    %c0_i32 = arith.constant 0 : i32
    %c0_i32_0 = arith.constant 0 : i32
    %c0_i32_1 = arith.constant 0 : i32
    return %c0_i32, %c0_i32_0 : i32, i32
  }
  func.func @transform_2(%arg0: i32) -> (i32, i32) {
    %c0_i32 = arith.constant 0 : i32
    %c0_i32_0 = arith.constant 0 : i32
    %c0_i32_1 = arith.constant 0 : i32
    return %c0_i32, %c0_i32_0 : i32, i32
  }
  func.func @transform_3(%arg0: i32) -> (i32, i32) {
    %c0_i32 = arith.constant 0 : i32
    %c0_i32_0 = arith.constant 0 : i32
    %c0_i32_1 = arith.constant 0 : i32
    return %c0_i32, %c0_i32_0 : i32, i32
  }
  func.func @transform_4(%arg0: i32) -> (i32, i32) {
    %c0_i32 = arith.constant 0 : i32
    %c0_i32_0 = arith.constant 0 : i32
    %c0_i32_1 = arith.constant 0 : i32
    return %c0_i32, %c0_i32_0 : i32, i32
  }
  func.func @transform_5(%arg0: i32) -> (i32, i32) {
    %c0_i32 = arith.constant 0 : i32
    %c0_i32_0 = arith.constant 0 : i32
    %c0_i32_1 = arith.constant 0 : i32
    return %c0_i32, %c0_i32_0 : i32, i32
  }
  func.func @transform_6(%arg0: i32) -> (i32, i32) {
    %c0_i32 = arith.constant 0 : i32
    %c0_i32_0 = arith.constant 0 : i32
    %c0_i32_1 = arith.constant 0 : i32
    return %c0_i32, %c0_i32_0 : i32, i32
  }
  func.func @transform_7(%arg0: i32) -> (i32, i32) {
    %c0_i32 = arith.constant 0 : i32
    %c0_i32_0 = arith.constant 0 : i32
    return %arg0, %c0_i32 : i32, i32
  }
}

</mosaic_0001>

<llo_original>
// kernel: stroke_dnn_forward.1
$region0: #{stroke_dnn_forward.1}
  #allocation0 [shape = 'u32[]', space=smem, size = 0x4, offset = 0x4, fixed_abs, tag = 'smem constant byte address 0x4 - core index']
  #allocation1 [shape = 'u32[72,128]{1,0:T(1,128)}', space=vmem, size = 0x9000, scoped, tag = 'internal scratch']
  %s0 = inlined_call_operand.vmem [shape: bf16[8,16], index: 0, kind: input, shape index: {}]
  %s1 = inlined_call_operand.vmem [shape: bf16[16,128], index: 1, kind: input, shape index: {}]
  %s2 = inlined_call_operand.vmem [shape: f32[1,128], index: 2, kind: input, shape index: {}]
  %s3 = inlined_call_operand.hbm [shape: bf16[128,128], index: 3, kind: input, shape index: {}]
  %s4 = inlined_call_operand.vmem [shape: f32[1,128], index: 4, kind: input, shape index: {}]
  %s5 = inlined_call_operand.hbm [shape: bf16[128,128], index: 5, kind: input, shape index: {}]
  %s6 = inlined_call_operand.vmem [shape: f32[1,128], index: 6, kind: input, shape index: {}]
  %s7 = inlined_call_operand.vmem [shape: f32[8,1], index: 7, kind: output, shape index: {}]
  %s8 = sld [smem:[#allocation0]]
  $region46: #{stroke_dnn_forward.1} parent=0
    _
  %s10 = ssub.s32 1, %s8
  %s11 = scalar_select 0, %s10, %s8
  $region1: #{stroke_dnn_forward.1} parent=0
    #allocation2 [shape = 'u8[32768]{0}', space=vmem, size = 0x8000, scoped, tag = 'input window, operand 3, single buffered']
    #allocation3 [shape = 's32[1]{0}', space=sflag, size = 0x4, scoped, tag = 'scoped memory for stroke_dnn_forward.1']
    #allocation4 [shape = 'u8[32768]{0}', space=vmem, size = 0x8000, scoped, tag = 'input window, operand 5, single buffered']
    #allocation5 [shape = 's32[1]{0}', space=sflag, size = 0x4, scoped, tag = 'scoped memory for stroke_dnn_forward.1']
    %12 = vsyncpa [#allocation3], 0
    %13 = vsyncpa [#allocation5], 0
    // Predicated region
    $region2: #{stroke_dnn_forward.1} parent=1 // pred_check
      _
    $region3: #{stroke_dnn_forward.1} parent=1 // pred_check_branch
      %15 = sbr.rel (0) target = $region5
    $region4: #{stroke_dnn_forward.1} parent=1 // pred_region
      _
    $region5: #{stroke_dnn_forward.1} parent=1 // pred_fallthru
      _
    // Predicated region
    $region6: #{stroke_dnn_forward.1} parent=1 // pred_check
      _
    $region7: #{stroke_dnn_forward.1} parent=1 // pred_check_branch
      %17 = sbr.rel (0) target = $region9
    $region8: #{stroke_dnn_forward.1} parent=1 // pred_region
      _
    $region9: #{stroke_dnn_forward.1} parent=1 // pred_fallthru
      _
    // Predicated region
    $region10: #{stroke_dnn_forward.1} parent=1 // pred_check
      _
    $region11: #{stroke_dnn_forward.1} parent=1 // pred_check_branch
      %19 = sbr.rel (0) target = $region13
    $region12: #{stroke_dnn_forward.1} parent=1 // pred_region
      _
    $region13: #{stroke_dnn_forward.1} parent=1 // pred_fallthru
      _
    // Predicated region
    $region14: #{stroke_dnn_forward.1} parent=1 // pred_check
      _
    $region15: #{stroke_dnn_forward.1} parent=1 // pred_check_branch
      %21 = sbr.rel (0) target = $region17
    $region16: #{stroke_dnn_forward.1} parent=1 // pred_region
      %23 = vsyncadd [#allocation3], 0
      %s24 = sshll.u32 %s3, 4
      %s25 = int_to_ptr.hbm [resolvable:$true] %s24
      %s26 = sshll.u32 [#allocation2], 4
      %s27 = int_to_ptr.vmem [resolvable:$true] %s26
      %32 = dma.hbm_to_vmem [thread:$0]  %s25, 1024, %s27, [#allocation3], 64, 64, 4
    $region17: #{stroke_dnn_forward.1} parent=1 // pred_fallthru
      _
    // Predicated region
    $region18: #{stroke_dnn_forward.1} parent=1 // pred_check
      _
    $region19: #{stroke_dnn_forward.1} parent=1 // pred_check_branch
      %34 = sbr.rel (0) target = $region21
    $region20: #{stroke_dnn_forward.1} parent=1 // pred_region
      _
    $region21: #{stroke_dnn_forward.1} parent=1 // pred_fallthru
      _
    // Predicated region
    $region22: #{stroke_dnn_forward.1} parent=1 // pred_check
      _
    $region23: #{stroke_dnn_forward.1} parent=1 // pred_check_branch
      %36 = sbr.rel (0) target = $region25
    $region24: #{stroke_dnn_forward.1} parent=1 // pred_region
      %38 = vsyncadd [#allocation5], 0
      %s39 = sshll.u32 %s5, 4
      %s40 = int_to_ptr.hbm [resolvable:$true] %s39
      %s41 = sshll.u32 [#allocation4], 4
      %s42 = int_to_ptr.vmem [resolvable:$true] %s41
      %47 = dma.hbm_to_vmem [thread:$0]  %s40, 1024, %s42, [#allocation5], 64, 64, 4
    $region25: #{stroke_dnn_forward.1} parent=1 // pred_fallthru
      _
    // Predicated region
    $region26: #{stroke_dnn_forward.1} parent=1 // pred_check
      _
    $region27: #{stroke_dnn_forward.1} parent=1 // pred_check_branch
      %49 = sbr.rel (0) target = $region29
    $region28: #{stroke_dnn_forward.1} parent=1 // pred_region
      _
    $region29: #{stroke_dnn_forward.1} parent=1 // pred_fallthru
      _
    // Predicated region
    $region30: #{stroke_dnn_forward.1} parent=1 // pred_check
      _
    $region31: #{stroke_dnn_forward.1} parent=1 // pred_check_branch
      %51 = sbr.rel (0) target = $region33
    $region32: #{stroke_dnn_forward.1} parent=1 // pred_region
      %53 = dma.done [#allocation3], 1024
    $region33: #{stroke_dnn_forward.1} parent=1 // pred_fallthru
      _
    // Predicated region
    $region34: #{stroke_dnn_forward.1} parent=1 // pred_check
      _
    $region35: #{stroke_dnn_forward.1} parent=1 // pred_check_branch
      %55 = sbr.rel (0) target = $region37
    $region36: #{stroke_dnn_forward.1} parent=1 // pred_region
      %57 = dma.done [#allocation5], 1024
    $region37: #{stroke_dnn_forward.1} parent=1 // pred_fallthru
      _
    %v59 = vld [vmem:[%s0] sm:$0xf]
    %v60 = vld [vmem:[%s1] sm:$0xf]
    %v61 = vld [vmem:[%s1 + $0x4] sm:$0xf]
    %v62 = vld [vmem:[%s2] sm:$0x1]
    %v64 = vperm.slane %v62, 0
    %v68 = vunpack.c.l.b16 %v60
    %v69 = vunpack.c.l.b16 %v61
    %v70 = vpack.c.b16 %v69, %v68
    %vm72 = vcmask 130048
    %v74 = vsel %vm72, %v59, 0
    %76 = vmatpush.bf16.msra.mxu0 0
    %77 = vmatpush.bf16.msra.mxu0 0
    %78 = vmatpush.bf16.msra.mxu0 0
    %79 = vmatpush.bf16.msra.mxu0 0
    %80 = vmatpush.bf16.msra.mxu0 0
    %81 = vmatpush.bf16.msra.mxu0 0
    %82 = vmatpush.bf16.msra.mxu0 0
    %83 = vmatpush.bf16.msra.mxu0 %v70
    %84 = vmatmul.bf16.gmra.mxu0 %v74
    %v85 = vpop.f32.mrf.mxu0
    %v86 = vadd.f32 %v64, %v85
    %v87 = vpop.f32.mrf.mxu0
    %88 = vdwg.mxu0
    %v89 = vmax.f32 %v86, 0.0
    %v90 = vld [vmem:[#allocation2] sm:$0xf]
    %v91 = vld [vmem:[#allocation2 + $0x4] sm:$0xf]
    %v92 = vld [vmem:[#allocation2 + $0x8] sm:$0xf]
    %v93 = vld [vmem:[#allocation2 + $0xc] sm:$0xf]
    %v94 = vld [vmem:[#allocation2 + $0x10] sm:$0xf]
    %v95 = vld [vmem:[#allocation2 + $0x14] sm:$0xf]
    %v96 = vld [vmem:[#allocation2 + $0x18] sm:$0xf]
    %v97 = vld [vmem:[#allocation2 + $0x1c] sm:$0xf]
    %v98 = vld [vmem:[#allocation2 + $0x20] sm:$0xf]
    %v99 = vld [vmem:[#allocation2 + $0x24] sm:$0xf]
    %v100 = vld [vmem:[#allocation2 + $0x28] sm:$0xf]
    %v101 = vld [vmem:[#allocation2 + $0x2c] sm:$0xf]
    %v102 = vld [vmem:[#allocation2 + $0x30] sm:$0xf]
    %v103 = vld [vmem:[#allocation2 + $0x34] sm:$0xf]
    %v104 = vld [vmem:[#allocation2 + $0x38] sm:$0xf]
    %v105 = vld [vmem:[#allocation2 + $0x3c] sm:$0xf]
    %v106 = vld [vmem:[%s4] sm:$0x1]
    %v107 = vpack.c.bf16 %v89, %v89
    %v109 = vperm.slane %v106, 0
    %v127 = vunpack.c.l.b16 %v90
    %v128 = vunpack.c.l.b16 %v91
    %v129 = vunpack.c.l.b16 %v92
    %v130 = vunpack.c.l.b16 %v93
    %v131 = vunpack.c.l.b16 %v94
    %v132 = vunpack.c.l.b16 %v95
    %v133 = vunpack.c.l.b16 %v96
    %v134 = vunpack.c.l.b16 %v97
    %v135 = vunpack.c.l.b16 %v98
    %v136 = vunpack.c.l.b16 %v99
    %v137 = vunpack.c.l.b16 %v100
    %v138 = vunpack.c.l.b16 %v101
    %v139 = vunpack.c.l.b16 %v102
    %v140 = vunpack.c.l.b16 %v103
    %v141 = vunpack.c.l.b16 %v104
    %v142 = vunpack.c.l.b16 %v105
    %v143 = vpack.c.b16 %v128, %v127
    %v144 = vpack.c.b16 %v130, %v129
    %v145 = vpack.c.b16 %v132, %v131
    %v146 = vpack.c.b16 %v134, %v133
    %v147 = vpack.c.b16 %v136, %v135
    %v148 = vpack.c.b16 %v138, %v137
    %v149 = vpack.c.b16 %v140, %v139
    %v150 = vpack.c.b16 %v142, %v141
    %159 = vmatpush.bf16.msra.mxu0 %v150
    %160 = vmatpush.bf16.msra.mxu0 %v149
    %161 = vmatpush.bf16.msra.mxu0 %v148
    %162 = vmatpush.bf16.msra.mxu0 %v147
    %163 = vmatpush.bf16.msra.mxu0 %v146
    %164 = vmatpush.bf16.msra.mxu0 %v145
    %165 = vmatpush.bf16.msra.mxu0 %v144
    %166 = vmatpush.bf16.msra.mxu0 %v143
    %167 = vmatmul.bf16.gmra.mxu0 %v107
    %v168 = vpop.f32.mrf.mxu0
    %v169 = vadd.f32 %v109, %v168
    %v170 = vpop.f32.mrf.mxu0
    %171 = vdwg.mxu0
    %v172 = vmax.f32 %v169, 0.0
    %v173 = vld [vmem:[#allocation4] sm:$0xf]
    %v174 = vld [vmem:[#allocation4 + $0x4] sm:$0xf]
    %v175 = vld [vmem:[#allocation4 + $0x8] sm:$0xf]
    %v176 = vld [vmem:[#allocation4 + $0xc] sm:$0xf]
    %v177 = vld [vmem:[#allocation4 + $0x10] sm:$0xf]
    %v178 = vld [vmem:[#allocation4 + $0x14] sm:$0xf]
    %v179 = vld [vmem:[#allocation4 + $0x18] sm:$0xf]
    %v180 = vld [vmem:[#allocation4 + $0x1c] sm:$0xf]
    %v181 = vld [vmem:[#allocation4 + $0x20] sm:$0xf]
    %v182 = vld [vmem:[#allocation4 + $0x24] sm:$0xf]
    %v183 = vld [vmem:[#allocation4 + $0x28] sm:$0xf]
    %v184 = vld [vmem:[#allocation4 + $0x2c] sm:$0xf]
    %v185 = vld [vmem:[#allocation4 + $0x30] sm:$0xf]
    %v186 = vld [vmem:[#allocation4 + $0x34] sm:$0xf]
    %v187 = vld [vmem:[#allocation4 + $0x38] sm:$0xf]
    %v188 = vld [vmem:[#allocation4 + $0x3c] sm:$0xf]
    %v189 = vld [vmem:[%s6] sm:$0x1]
    %v190 = vpack.c.bf16 %v172, %v172
    %v192 = vperm.slane %v189, 0
    %v210 = vunpack.c.l.b16 %v173
    %v211 = vunpack.c.l.b16 %v174
    %v212 = vunpack.c.l.b16 %v175
    %v213 = vunpack.c.l.b16 %v176
    %v214 = vunpack.c.l.b16 %v177
    %v215 = vunpack.c.l.b16 %v178
    %v216 = vunpack.c.l.b16 %v179
    %v217 = vunpack.c.l.b16 %v180
    %v218 = vunpack.c.l.b16 %v181
    %v219 = vunpack.c.l.b16 %v182
    %v220 = vunpack.c.l.b16 %v183
    %v221 = vunpack.c.l.b16 %v184
    %v222 = vunpack.c.l.b16 %v185
    %v223 = vunpack.c.l.b16 %v186
    %v224 = vunpack.c.l.b16 %v187
    %v225 = vunpack.c.l.b16 %v188
    %v226 = vpack.c.b16 %v211, %v210
    %v227 = vpack.c.b16 %v213, %v212
    %v228 = vpack.c.b16 %v215, %v214
    %v229 = vpack.c.b16 %v217, %v216
    %v230 = vpack.c.b16 %v219, %v218
    %v231 = vpack.c.b16 %v221, %v220
    %v232 = vpack.c.b16 %v223, %v222
    %v233 = vpack.c.b16 %v225, %v224
    %242 = vmatpush.bf16.msra.mxu0 %v233
    %243 = vmatpush.bf16.msra.mxu0 %v232
    %244 = vmatpush.bf16.msra.mxu0 %v231
    %245 = vmatpush.bf16.msra.mxu0 %v230
    %246 = vmatpush.bf16.msra.mxu0 %v229
    %247 = vmatpush.bf16.msra.mxu0 %v228
    %248 = vmatpush.bf16.msra.mxu0 %v227
    %249 = vmatpush.bf16.msra.mxu0 %v226
    %250 = vmatmul.bf16.gmra.mxu0 %v190
    %v251 = vpop.f32.mrf.mxu0
    %v252 = vadd.f32 %v192, %v251
    %v253 = vpop.f32.mrf.mxu0
    %254 = vdwg.mxu0
    %v255 = vxor.u32 %v252, 2147483648
    %v256 = vmul.f32 %v255, 1.442695
    %v257 = vpow.pop %v256
    %v258 = vadd.f32 %v257, 1.0
    %v259 = vrcp.pop %v258
    %v260 = vmul.f32 %v258, %v259
    %v261 = vsub.f32 1.0, %v260
    %v262 = vmul.f32 %v259, %v261
    %v263 = vadd.f32 %v259, %v262
    %vm264 = vweird.f32 %v258
    %vm265 = vweird.f32 %v259
    %vm266 = vmor %vm264, %vm265
    %v267 = vsel %vm266, %v259, %v263
    %v268 = vand.u32 2147483647, %v258
    %vm269 = vcmp.eq.f32.partialorder %v268, 8.507059e+37
    %v270 = vand.u32 %v258, 2147483648
    %v271 = vor.u32 1.1754944e-38, %v270
    %v272 = vsel %vm269, %v271, %v267
    %v273 = vmul.f32 1.0, %v272
    %vm274 = vcmask 7168
    %275 = vst.msk [vmem:[%s7] sm:$0xff] %vm274, %v273
    // Predicated region
    $region38: #{stroke_dnn_forward.1} parent=1 // pred_check
      _
    $region39: #{stroke_dnn_forward.1} parent=1 // pred_check_branch
      %277 = sbr.rel (0) target = $region41
    $region40: #{stroke_dnn_forward.1} parent=1 // pred_region
      _
    $region41: #{stroke_dnn_forward.1} parent=1 // pred_fallthru
      _
    // Predicated region
    $region42: #{stroke_dnn_forward.1} parent=1 // pred_check
      _
    $region43: #{stroke_dnn_forward.1} parent=1 // pred_check_branch
      %279 = sbr.rel (0) target = $region45
    $region44: #{stroke_dnn_forward.1} parent=1 // pred_region
      _
    $region45: #{stroke_dnn_forward.1} parent=1 // pred_fallthru
      _
    %280 = vsyncpa [#allocation3], 1
    %281 = vsyncpa [#allocation5], 1

</llo_original>
